<compile_context>
chip_gen: v7x
topology: tpu7x:2x2x1
jax: 0.10.0
libtpu: 0.0.40
codegen_flags: <defaults>
</compile_context>

<pallas_src>
import functools

import jax
import jax.numpy as jnp
from jax import lax
from jax.experimental import pallas as pl
from jax.experimental.pallas import tpu as pltpu


_MXU_ALIGN = 256                     # multiple of 128 too -> valid on v5e/v6e/v7x
_SMALL_VMEM = 64 * 1024 * 1024       # v7x per-TensorCore VMEM


def _round_up(x, m):
    return (x + m - 1) // m * m


def _vmem_capacity_bytes():
    try:
        return int(pltpu.get_tpu_info().vmem_capacity_bytes)
    except Exception:
        return _SMALL_VMEM           # conservative fallback (v7x per-TC)


def _choose_tiling(N, E, O, x_bytes, w_bytes):
    """Generation-aware row tile height and scoped-VMEM limit."""
    vmem_cap = _vmem_capacity_bytes()
    small_vmem = vmem_cap <= _SMALL_VMEM   # v7x-like: 64 MiB/TC, 2 TCs/chip

    # Default tile heights (HBM-roofline needs >=512 rows on 128-MiB chips).
    if small_vmem:
        tn = 256 if E > 1024 else 512
    else:
        tn = 512 if E > 1024 else 1024

    # VMEM budget with ~30% headroom for Mosaic internal scratch / regalloc.
    budget = int(vmem_cap * 0.70)
    # Grid-invariant operands are single-buffered (pl.Buffered(1)).
    weight_bytes = 2 * E * E * w_bytes + O * E * w_bytes + 3 * E * 4 + O * 4
    avail = budget - weight_bytes
    # Per tile row: 2 double-buffered input blocks + output block + ~3 f32 temps.
    per_row = 2 * 2 * E * x_bytes + 2 * O * 4 + 3 * E * 4
    if avail > 0:
        tn_fit = (avail // per_row) // _MXU_ALIGN * _MXU_ALIGN
        tn = min(tn, max(_MXU_ALIGN, tn_fit))

    # v7x: keep >= 2 grid steps when N allows, so both TensorCores get work.
    if small_vmem and N > 2 * _MXU_ALIGN:
        tn = min(tn, max(_MXU_ALIGN, _round_up(pl.cdiv(N, 2), _MXU_ALIGN)))

    # Never larger than the sublane-padded row count (tiny-N case), keep 8-aligned,
    # and keep MXU-height alignment whenever the tile is big enough.
    tn = max(8, min(tn, _round_up(N, 8)))
    if tn >= _MXU_ALIGN:
        tn = (tn // _MXU_ALIGN) * _MXU_ALIGN

    vmem_limit = min(int(vmem_cap * 0.85), 128 * 1024 * 1024)
    return tn, vmem_limit


def _link_predict_kernel(xi_ref, xj_ref, w1a_ref, w1b_ref, b1_ref,
                         gamma_ref, beta_ref, w2t_ref, b2_ref, out_ref):
    # xi_ref, xj_ref: [TN, E]
    # w1a_ref, w1b_ref: [E, E]     b1_ref / gamma_ref / beta_ref: [1, E]
    # w2t_ref: [O, E]              b2_ref: [1, O]        out_ref: [TN, O]

    # Linear 1 over the (virtual) concatenated feature dim, on the MXU.
    # Operands in native dtype (f32 or bf16), accumulation in f32.
    h = jnp.dot(xi_ref[...], w1a_ref[...], preferred_element_type=jnp.float32)
    h = h + jnp.dot(xj_ref[...], w1b_ref[...], preferred_element_type=jnp.float32)
    h = h + b1_ref[...].astype(jnp.float32)

    # LayerNorm over last dim (torch default eps=1e-5, biased variance),
    # two-pass (centered) variance for numerical robustness.
    inv_e = jnp.float32(1.0 / h.shape[-1])
    mean = jnp.sum(h, axis=-1, keepdims=True) * inv_e
    centered = h - mean
    var = jnp.sum(centered * centered, axis=-1, keepdims=True) * inv_e
    inv = lax.rsqrt(var + jnp.float32(1e-5))
    hn = centered * inv * gamma_ref[...].astype(jnp.float32) \
         + beta_ref[...].astype(jnp.float32)

    # Exact (erf-based) GELU, matching torch nn.GELU() default.
    g = 0.5 * hn * (1.0 + lax.erf(hn * jnp.float32(0.7071067811865476)))

    # Linear 2 + sigmoid.
    w2t = w2t_ref[...].astype(jnp.float32)   # [O, E]
    b2 = b2_ref[...].astype(jnp.float32)     # [1, O]
    if w2t.shape[0] == 1:
        # output_dim == 1: VPU multiply + lane reduction instead of a
        # degenerate 1-output-lane MXU matmul.
        y = jnp.sum(g * w2t, axis=-1, keepdims=True) + b2
    else:
        y = lax.dot_general(g, w2t, (((1,), (1,)), ((), ())),
                            preferred_element_type=jnp.float32) + b2

    out_ref[...] = jax.nn.sigmoid(y).astype(out_ref.dtype)


@functools.partial(jax.jit, static_argnames=("tile_n", "use_bf16_mxu"))
def link_predict_head(x_i, x_j, params, tile_n=None, use_bf16_mxu=False):
    """Forward pass of LinkPredictHead.

    x_i, x_j: [N, E]; returns sigmoid(net(cat([x_i, x_j], -1))) of shape [N, O].
    """
    w1, b1, gamma, beta, w2, b2 = params
    N, E = x_i.shape
    O = w2.shape[1]

    # Split W1 along its 2E input dim so the [N, 2E] concat is never materialized.
    w1a = w1[:E]     # [E, E] acts on x_i
    w1b = w1[E:]     # [E, E] acts on x_j
    w2t = w2.T       # [O, E] -> Linear-2 is a lane reduction when O == 1

    if use_bf16_mxu:
        # MXU is bf16-native on all generations; accumulation stays f32 so the
        # LayerNorm/GELU epilogue precision is unchanged.
        x_i = x_i.astype(jnp.bfloat16)
        x_j = x_j.astype(jnp.bfloat16)
        w1a = w1a.astype(jnp.bfloat16)
        w1b = w1b.astype(jnp.bfloat16)

    x_bytes = jnp.dtype(x_i.dtype).itemsize
    w_bytes = jnp.dtype(w1a.dtype).itemsize
    tn, vmem_limit = _choose_tiling(N, E, O, x_bytes, w_bytes)
    if tile_n is not None:
        tn = max(8, min(_round_up(tile_n, 8), _round_up(N, 8)))

    # No wrapper-side pad: partial last block rows are masked on store, and all
    # per-row math (LN/GELU/sigmoid) is row-local, so garbage rows are inert.
    grid = (pl.cdiv(N, tn),)
    row = lambda i: (i, 0)
    full = lambda i: (0, 0)          # grid-invariant weight/bias blocks
    single = pl.Buffered(1)          # single-buffer grid-invariant operands

    cost = pl.CostEstimate(
        flops=4 * N * E * E + 2 * N * E * O + 12 * N * E,
        transcendentals=2 * N * E + N * O,
        bytes_accessed=2 * N * E * x_bytes + (2 * E * E + O * E) * w_bytes
                       + (3 * E + O) * 4 + N * O * 4,
    )

    out = pl.pallas_call(
        _link_predict_kernel,
        out_shape=jax.ShapeDtypeStruct((N, O), jnp.float32),
        grid_spec=pltpu.PrefetchScalarGridSpec(
            num_scalar_prefetch=0,
            grid=grid,
            in_specs=[
                pl.BlockSpec((tn, E), row),                          # x_i tile
                pl.BlockSpec((tn, E), row),                          # x_j tile
                pl.BlockSpec((E, E), full, pipeline_mode=single),    # W1[:E]
                pl.BlockSpec((E, E), full, pipeline_mode=single),    # W1[E:]
                pl.BlockSpec((1, E), full, pipeline_mode=single),    # b1
                pl.BlockSpec((1, E), full, pipeline_mode=single),    # gamma
                pl.BlockSpec((1, E), full, pipeline_mode=single),    # beta
                pl.BlockSpec((O, E), full, pipeline_mode=single),    # W2^T
                pl.BlockSpec((1, O), full, pipeline_mode=single),    # b2
            ],
            out_specs=pl.BlockSpec((tn, O), row),
        ),
        compiler_params=pltpu.CompilerParams(
            dimension_semantics=("parallel",),
            vmem_limit_bytes=vmem_limit,
        ),
        cost_estimate=cost,
    )(x_i, x_j, w1a, w1b, b1, gamma, beta, w2t, b2)

    return out


def init_params(key, embed_dim, output_dim=1):
    """Deterministic synthetic parameters matching the module's shapes."""
    k1, k2, k3, k4 = jax.random.split(key, 4)
    # Linear(2E, E): weight stored [2E, E] (transposed vs torch), bias [1, E]
    w1 = jax.random.normal(k1, (2 * embed_dim, embed_dim), jnp.float32) * 0.05
    b1 = jax.random.normal(k2, (1, embed_dim), jnp.float32) * 0.01
    # LayerNorm(E)
    gamma = jnp.ones((1, embed_dim), jnp.float32)
    beta = jnp.zeros((1, embed_dim), jnp.float32)
    # Linear(E, output_dim)
    w2 = jax.random.normal(k3, (embed_dim, output_dim), jnp.float32) * 0.05
    b2 = jax.random.normal(k4, (1, output_dim), jnp.float32) * 0.01
    return (w1, b1, gamma, beta, w2, b2)


def _reference(x_i, x_j, params):
    """Pure-JAX reference (mirrors the PyTorch forward)."""
    w1, b1, gamma, beta, w2, b2 = params
    x = jnp.concatenate([x_i, x_j], axis=-1)
    h = x @ w1 + b1
    mean = h.mean(-1, keepdims=True)
    var = ((h - mean) ** 2).mean(-1, keepdims=True)
    hn = (h - mean) / jnp.sqrt(var + 1e-5) * gamma + beta
    g = 0.5 * hn * (1.0 + lax.erf(hn / jnp.sqrt(2.0)))
    return jax.nn.sigmoid(g @ w2 + b2)


if __name__ == "__main__":
    E, O = 32, 1
    key = jax.random.PRNGKey(0)
    kx, ky, kp, kx2, ky2, kx3, ky3 = jax.random.split(key, 7)
    params = init_params(kp, E, O)

    # 1) Small full-block case (N = 8 node pairs).
    x_i = jax.random.normal(kx, (8, E), jnp.float32)
    x_j = jax.random.normal(ky, (8, E), jnp.float32)
    out = jax.block_until_ready(link_predict_head(x_i, x_j, params))
    ref = _reference(x_i, x_j, params)
    assert out.shape == (8, O)
    assert jnp.allclose(out, ref, atol=1e-5, rtol=1e-5), (out, ref)

    # 2) Multi-step grid with a partial last block (N = 20, tile_n = 8): exercises
    #    the no-pad tail path (masked OOB rows).
    x_i2 = jax.random.normal(kx2, (20, E), jnp.float32)
    x_j2 = jax.random.normal(ky2, (20, E), jnp.float32)
    out2 = jax.block_until_ready(link_predict_head(x_i2, x_j2, params, tile_n=8))
    ref2 = _reference(x_i2, x_j2, params)
    assert out2.shape == (20, O)
    assert jnp.allclose(out2, ref2, atol=1e-5, rtol=1e-5), (out2, ref2)

    # 3) Optional bf16-MXU fast path (looser tolerance).
    x_i3 = jax.random.normal(kx3, (16, E), jnp.float32)
    x_j3 = jax.random.normal(ky3, (16, E), jnp.float32)
    out3 = jax.block_until_ready(
        link_predict_head(x_i3, x_j3, params, use_bf16_mxu=True))
    ref3 = _reference(x_i3, x_j3, params)
    assert out3.shape == (16, O)
    assert jnp.allclose(out3, ref3, atol=2e-2), (out3, ref3)

    print("KERNEL_OK")
</pallas_src>

<mosaic_0001>
module attributes {stable_mosaic.version = 11 : i64} {
  func.func @_link_predict_kernel(%arg0: i32, %arg1: memref<8x32xf32, #tpu.memory_space<vmem>>, %arg2: memref<8x32xf32, #tpu.memory_space<vmem>>, %arg3: memref<32x32xf32, #tpu.memory_space<vmem>>, %arg4: memref<32x32xf32, #tpu.memory_space<vmem>>, %arg5: memref<1x32xf32, #tpu.memory_space<vmem>>, %arg6: memref<1x32xf32, #tpu.memory_space<vmem>>, %arg7: memref<1x32xf32, #tpu.memory_space<vmem>>, %arg8: memref<1x32xf32, #tpu.memory_space<vmem>>, %arg9: memref<1x1xf32, #tpu.memory_space<vmem>>, %arg10: memref<8x1xf32, #tpu.memory_space<vmem>>) attributes {dimension_semantics = [#tpu.dimension_semantics<parallel>], iteration_bounds = array<i64: 1>, scalar_prefetch = 0 : i64, scratch_operands = 0 : i64, tpu.core_type = #tpu.core_type<tc>, window_params = [{transform_indices = @transform_0, window_bounds = array<i64: 8, 32>}, {transform_indices = @transform_1, window_bounds = array<i64: 8, 32>}, {pipeline_mode = #tpu.pipeline_mode<synchronous>, transform_indices = @transform_2, window_bounds = array<i64: 32, 32>}, {pipeline_mode = #tpu.pipeline_mode<synchronous>, transform_indices = @transform_3, window_bounds = array<i64: 32, 32>}, {pipeline_mode = #tpu.pipeline_mode<synchronous>, transform_indices = @transform_4, window_bounds = array<i64: 1, 32>}, {pipeline_mode = #tpu.pipeline_mode<synchronous>, transform_indices = @transform_5, window_bounds = array<i64: 1, 32>}, {pipeline_mode = #tpu.pipeline_mode<synchronous>, transform_indices = @transform_6, window_bounds = array<i64: 1, 32>}, {pipeline_mode = #tpu.pipeline_mode<synchronous>, transform_indices = @transform_7, window_bounds = array<i64: 1, 32>}, {pipeline_mode = #tpu.pipeline_mode<synchronous>, transform_indices = @transform_8, window_bounds = array<i64: 1, 1>}, {transform_indices = @transform_9, window_bounds = array<i64: 8, 1>}]} {
    %c0 = arith.constant 0 : index
    %c0_0 = arith.constant 0 : index
    %0 = vector.load %arg1[%c0, %c0_0] : memref<8x32xf32, #tpu.memory_space<vmem>>, vector<8x32xf32>
    %c0_1 = arith.constant 0 : index
    %c0_2 = arith.constant 0 : index
    %1 = vector.load %arg3[%c0_1, %c0_2] : memref<32x32xf32, #tpu.memory_space<vmem>>, vector<32x32xf32>
    %cst = arith.constant dense<0.000000e+00> : vector<8x32xf32>
    %2 = tpu.matmul %0, %1, %cst {dimension_numbers = #tpu.dot_dimension_numbers<[1], [0], [0], [1], [0, 0, 1, 1], [], []>} : vector<8x32xf32>, vector<32x32xf32>, vector<8x32xf32> -> vector<8x32xf32>
    %c0_3 = arith.constant 0 : index
    %c0_4 = arith.constant 0 : index
    %3 = vector.load %arg2[%c0_3, %c0_4] : memref<8x32xf32, #tpu.memory_space<vmem>>, vector<8x32xf32>
    %c0_5 = arith.constant 0 : index
    %c0_6 = arith.constant 0 : index
    %4 = vector.load %arg4[%c0_5, %c0_6] : memref<32x32xf32, #tpu.memory_space<vmem>>, vector<32x32xf32>
    %cst_7 = arith.constant dense<0.000000e+00> : vector<8x32xf32>
    %5 = tpu.matmul %3, %4, %cst_7 {dimension_numbers = #tpu.dot_dimension_numbers<[1], [0], [0], [1], [0, 0, 1, 1], [], []>} : vector<8x32xf32>, vector<32x32xf32>, vector<8x32xf32> -> vector<8x32xf32>
    %6 = arith.addf %2, %5 : vector<8x32xf32>
    %c0_8 = arith.constant 0 : index
    %c0_9 = arith.constant 0 : index
    %7 = vector.load %arg5[%c0_8, %c0_9] : memref<1x32xf32, #tpu.memory_space<vmem>>, vector<1x32xf32>
    %8 = vector.broadcast %7 : vector<1x32xf32> to vector<8x32xf32>
    %9 = arith.addf %6, %8 : vector<8x32xf32>
    %cst_10 = arith.constant dense<0.000000e+00> : vector<8xf32>
    %10 = vector.multi_reduction <add>, %9, %cst_10 [1] : vector<8x32xf32> to vector<8xf32>
    %11 = vector.shape_cast %10 : vector<8xf32> to vector<8x1xf32>
    %cst_11 = arith.constant 3.125000e-02 : f32
    %12 = vector.broadcast %cst_11 : f32 to vector<8x1xf32>
    %13 = arith.mulf %11, %12 : vector<8x1xf32>
    %14 = vector.broadcast %13 : vector<8x1xf32> to vector<8x32xf32>
    %15 = arith.subf %9, %14 : vector<8x32xf32>
    %16 = arith.mulf %15, %15 : vector<8x32xf32>
    %cst_12 = arith.constant dense<0.000000e+00> : vector<8xf32>
    %17 = vector.multi_reduction <add>, %16, %cst_12 [1] : vector<8x32xf32> to vector<8xf32>
    %18 = vector.shape_cast %17 : vector<8xf32> to vector<8x1xf32>
    %cst_13 = arith.constant 3.125000e-02 : f32
    %19 = vector.broadcast %cst_13 : f32 to vector<8x1xf32>
    %20 = arith.mulf %18, %19 : vector<8x1xf32>
    %cst_14 = arith.constant 9.99999974E-6 : f32
    %21 = vector.broadcast %cst_14 : f32 to vector<8x1xf32>
    %22 = arith.addf %20, %21 : vector<8x1xf32>
    %23 = math.rsqrt %22 : vector<8x1xf32>
    %24 = vector.broadcast %23 : vector<8x1xf32> to vector<8x32xf32>
    %25 = arith.mulf %15, %24 : vector<8x32xf32>
    %c0_15 = arith.constant 0 : index
    %c0_16 = arith.constant 0 : index
    %26 = vector.load %arg6[%c0_15, %c0_16] : memref<1x32xf32, #tpu.memory_space<vmem>>, vector<1x32xf32>
    %27 = vector.broadcast %26 : vector<1x32xf32> to vector<8x32xf32>
    %28 = arith.mulf %25, %27 : vector<8x32xf32>
    %c0_17 = arith.constant 0 : index
    %c0_18 = arith.constant 0 : index
    %29 = vector.load %arg7[%c0_17, %c0_18] : memref<1x32xf32, #tpu.memory_space<vmem>>, vector<1x32xf32>
    %30 = vector.broadcast %29 : vector<1x32xf32> to vector<8x32xf32>
    %31 = arith.addf %28, %30 : vector<8x32xf32>
    %cst_19 = arith.constant 5.000000e-01 : f32
    %32 = vector.broadcast %cst_19 : f32 to vector<8x32xf32>
    %33 = arith.mulf %32, %31 : vector<8x32xf32>
    %cst_20 = arith.constant 0.707106769 : f32
    %34 = vector.broadcast %cst_20 : f32 to vector<8x32xf32>
    %35 = arith.mulf %31, %34 : vector<8x32xf32>
    %36 = math.erf %35 : vector<8x32xf32>
    %cst_21 = arith.constant 1.000000e+00 : f32
    %37 = vector.broadcast %cst_21 : f32 to vector<8x32xf32>
    %38 = arith.addf %37, %36 : vector<8x32xf32>
    %39 = arith.mulf %33, %38 : vector<8x32xf32>
    %c0_22 = arith.constant 0 : index
    %c0_23 = arith.constant 0 : index
    %40 = vector.load %arg8[%c0_22, %c0_23] : memref<1x32xf32, #tpu.memory_space<vmem>>, vector<1x32xf32>
    %c0_24 = arith.constant 0 : index
    %c0_25 = arith.constant 0 : index
    %41 = vector.load %arg9[%c0_24, %c0_25] : memref<1x1xf32, #tpu.memory_space<vmem>>, vector<1x1xf32>
    %42 = vector.broadcast %40 : vector<1x32xf32> to vector<8x32xf32>
    %43 = arith.mulf %39, %42 : vector<8x32xf32>
    %cst_26 = arith.constant dense<0.000000e+00> : vector<8xf32>
    %44 = vector.multi_reduction <add>, %43, %cst_26 [1] : vector<8x32xf32> to vector<8xf32>
    %45 = vector.shape_cast %44 : vector<8xf32> to vector<8x1xf32>
    %46 = vector.broadcast %41 : vector<1x1xf32> to vector<8x1xf32>
    %47 = arith.addf %45, %46 : vector<8x1xf32>
    %48 = arith.negf %47 : vector<8x1xf32>
    %49 = math.exp %48 : vector<8x1xf32>
    %cst_27 = arith.constant 1.000000e+00 : f32
    %50 = vector.broadcast %cst_27 : f32 to vector<8x1xf32>
    %51 = arith.addf %50, %49 : vector<8x1xf32>
    %52 = arith.divf %50, %51 : vector<8x1xf32>
    %c0_28 = arith.constant 0 : index
    %c0_29 = arith.constant 0 : index
    %53 = vector.load %arg10[%c0_28, %c0_29] : memref<8x1xf32, #tpu.memory_space<vmem>>, vector<8x1xf32>
    tpu.vector_store %arg10[%c0_28, %c0_29], %52 {strides = array<i32>} : memref<8x1xf32, #tpu.memory_space<vmem>>, vector<8x1xf32>,
    return
  }
  func.func @transform_0(%arg0: i32) -> (i32, i32) {
    %c0_i32 = arith.constant 0 : i32
    %c0_i32_0 = arith.constant 0 : i32
    return %arg0, %c0_i32 : i32, i32
  }
  func.func @transform_1(%arg0: i32) -> (i32, i32) {
    %c0_i32 = arith.constant 0 : i32
    %c0_i32_0 = arith.constant 0 : i32
    return %arg0, %c0_i32 : i32, i32
  }
  func.func @transform_2(%arg0: i32) -> (i32, i32) {
    %c0_i32 = arith.constant 0 : i32
    %c0_i32_0 = arith.constant 0 : i32
    %c0_i32_1 = arith.constant 0 : i32
    return %c0_i32, %c0_i32_0 : i32, i32
  }
  func.func @transform_3(%arg0: i32) -> (i32, i32) {
    %c0_i32 = arith.constant 0 : i32
    %c0_i32_0 = arith.constant 0 : i32
    %c0_i32_1 = arith.constant 0 : i32
    return %c0_i32, %c0_i32_0 : i32, i32
  }
  func.func @transform_4(%arg0: i32) -> (i32, i32) {
    %c0_i32 = arith.constant 0 : i32
    %c0_i32_0 = arith.constant 0 : i32
    %c0_i32_1 = arith.constant 0 : i32
    return %c0_i32, %c0_i32_0 : i32, i32
  }
  func.func @transform_5(%arg0: i32) -> (i32, i32) {
    %c0_i32 = arith.constant 0 : i32
    %c0_i32_0 = arith.constant 0 : i32
    %c0_i32_1 = arith.constant 0 : i32
    return %c0_i32, %c0_i32_0 : i32, i32
  }
  func.func @transform_6(%arg0: i32) -> (i32, i32) {
    %c0_i32 = arith.constant 0 : i32
    %c0_i32_0 = arith.constant 0 : i32
    %c0_i32_1 = arith.constant 0 : i32
    return %c0_i32, %c0_i32_0 : i32, i32
  }
  func.func @transform_7(%arg0: i32) -> (i32, i32) {
    %c0_i32 = arith.constant 0 : i32
    %c0_i32_0 = arith.constant 0 : i32
    %c0_i32_1 = arith.constant 0 : i32
    return %c0_i32, %c0_i32_0 : i32, i32
  }
  func.func @transform_8(%arg0: i32) -> (i32, i32) {
    %c0_i32 = arith.constant 0 : i32
    %c0_i32_0 = arith.constant 0 : i32
    %c0_i32_1 = arith.constant 0 : i32
    return %c0_i32, %c0_i32_0 : i32, i32
  }
  func.func @transform_9(%arg0: i32) -> (i32, i32) {
    %c0_i32 = arith.constant 0 : i32
    %c0_i32_0 = arith.constant 0 : i32
    return %arg0, %c0_i32 : i32, i32
  }
}

</mosaic_0001>

<llo_original>
// kernel: link_predict_head.1
$region0: #{link_predict_head.1}
  #allocation0 [shape = 'u32[]', space=smem, size = 0x4, offset = 0x4, fixed_abs, tag = 'smem constant byte address 0x4 - core index']
  #allocation1 [shape = 'u32[144,128]{1,0:T(1,128)}', space=vmem, size = 0x12000, scoped, tag = 'internal scratch']
  #allocation2 [shape = 'f32[1,1]{1,0:T(1,128)S(1)}', space=vmem, size = 0x200, scoped, tag = 'scoped memory for link_predict_head.1']
  %s0 = inlined_call_operand.vmem [shape: f32[8,32], index: 0, kind: input, shape index: {}]
  %s1 = inlined_call_operand.vmem [shape: f32[8,32], index: 1, kind: input, shape index: {}]
  %s2 = inlined_call_operand.vmem [shape: f32[32,32], index: 2, kind: input, shape index: {}]
  %s3 = inlined_call_operand.vmem [shape: f32[32,32], index: 3, kind: input, shape index: {}]
  %s4 = inlined_call_operand.vmem [shape: f32[1,32], index: 4, kind: input, shape index: {}]
  %s5 = inlined_call_operand.vmem [shape: f32[1,32], index: 5, kind: input, shape index: {}]
  %s6 = inlined_call_operand.vmem [shape: f32[1,32], index: 6, kind: input, shape index: {}]
  %s7 = inlined_call_operand.vmem [shape: f32[1,32], index: 7, kind: input, shape index: {}]
  %s8 = inlined_call_operand.<no memory space> [shape: f32[1,1], index: 8, kind: input, shape index: {}]
  %s9 = inlined_call_operand.vmem [shape: f32[8,1], index: 9, kind: output, shape index: {}]
  %s10 = sld [smem:[#allocation0]]
  $region46: #{link_predict_head.1} parent=0
    _
  %s12 = ssub.s32 1, %s10
  %s13 = scalar_select 0, %s12, %s10
  %v14 = vstv %s8
  %15 = vst [vmem:[#allocation2] sm:$0x1] %v14
  // Predicated region
  $region2: #{link_predict_head.1} parent=0 // pred_check
    _
  $region3: #{link_predict_head.1} parent=0 // pred_check_branch
    %17 = sbr.rel (0) target = $region5
  $region4: #{link_predict_head.1} parent=0 // pred_region
    _
  $region5: #{link_predict_head.1} parent=0 // pred_fallthru
    _
  // Predicated region
  $region6: #{link_predict_head.1} parent=0 // pred_check
    _
  $region7: #{link_predict_head.1} parent=0 // pred_check_branch
    %19 = sbr.rel (0) target = $region9
  $region8: #{link_predict_head.1} parent=0 // pred_region
    _
  $region9: #{link_predict_head.1} parent=0 // pred_fallthru
    _
  // Predicated region
  $region10: #{link_predict_head.1} parent=0 // pred_check
    _
  $region11: #{link_predict_head.1} parent=0 // pred_check_branch
    %21 = sbr.rel (0) target = $region13
  $region12: #{link_predict_head.1} parent=0 // pred_region
    _
  $region13: #{link_predict_head.1} parent=0 // pred_fallthru
    _
  // Predicated region
  $region14: #{link_predict_head.1} parent=0 // pred_check
    _
  $region15: #{link_predict_head.1} parent=0 // pred_check_branch
    %23 = sbr.rel (0) target = $region17
  $region16: #{link_predict_head.1} parent=0 // pred_region
    _
  $region17: #{link_predict_head.1} parent=0 // pred_fallthru
    _
  // Predicated region
  $region18: #{link_predict_head.1} parent=0 // pred_check
    _
  $region19: #{link_predict_head.1} parent=0 // pred_check_branch
    %25 = sbr.rel (0) target = $region21
  $region20: #{link_predict_head.1} parent=0 // pred_region
    _
  $region21: #{link_predict_head.1} parent=0 // pred_fallthru
    _
  // Predicated region
  $region22: #{link_predict_head.1} parent=0 // pred_check
    _
  $region23: #{link_predict_head.1} parent=0 // pred_check_branch
    %27 = sbr.rel (0) target = $region25
  $region24: #{link_predict_head.1} parent=0 // pred_region
    _
  $region25: #{link_predict_head.1} parent=0 // pred_fallthru
    _
  // Predicated region
  $region26: #{link_predict_head.1} parent=0 // pred_check
    _
  $region27: #{link_predict_head.1} parent=0 // pred_check_branch
    %29 = sbr.rel (0) target = $region29
  $region28: #{link_predict_head.1} parent=0 // pred_region
    _
  $region29: #{link_predict_head.1} parent=0 // pred_fallthru
    _
  // Predicated region
  $region30: #{link_predict_head.1} parent=0 // pred_check
    _
  $region31: #{link_predict_head.1} parent=0 // pred_check_branch
    %31 = sbr.rel (0) target = $region33
  $region32: #{link_predict_head.1} parent=0 // pred_region
    _
  $region33: #{link_predict_head.1} parent=0 // pred_fallthru
    _
  // Predicated region
  $region34: #{link_predict_head.1} parent=0 // pred_check
    _
  $region35: #{link_predict_head.1} parent=0 // pred_check_branch
    %33 = sbr.rel (0) target = $region37
  $region36: #{link_predict_head.1} parent=0 // pred_region
    _
  $region37: #{link_predict_head.1} parent=0 // pred_fallthru
    _
  %v34 = vld [vmem:[%s0] sm:$0xff]
  %v35 = vld [vmem:[%s2] sm:$0xff]
  %v36 = vld [vmem:[%s2 + $0x8] sm:$0xff]
  %v37 = vld [vmem:[%s2 + $0x10] sm:$0xff]
  %v38 = vld [vmem:[%s2 + $0x18] sm:$0xff]
  %v39 = vld [vmem:[%s1] sm:$0xff]
  %v40 = vld [vmem:[%s3] sm:$0xff]
  %v41 = vld [vmem:[%s3 + $0x8] sm:$0xff]
  %v42 = vld [vmem:[%s3 + $0x10] sm:$0xff]
  %v43 = vld [vmem:[%s3 + $0x18] sm:$0xff]
  %vm44 = vcmask 261120
  %v46 = vsel %vm44, %v39, 0
  %48 = vmatprep.subr.mxu0 0.0
  %49 = vmatpush1.msra.mxu0 %v40
  %50 = vmatprep.subr.mxu0 0.0
  %51 = vmatpush1.msra.mxu0 %v41
  %52 = vmatprep.subr.mxu0 0.0
  %53 = vmatpush1.msra.mxu0 %v42
  %54 = vmatprep.subr.mxu0 0.0
  %55 = vmatpush1.msra.mxu0 %v43
  %56 = vmatprep.subr.mxu0 0.0
  %57 = vmatpush1.msra.mxu0 0.0
  %58 = vmatprep.subr.mxu0 0.0
  %59 = vmatpush1.msra.mxu0 0.0
  %60 = vmatprep.subr.mxu0 0.0
  %61 = vmatpush1.msra.mxu0 0.0
  %62 = vmatprep.subr.mxu0 0.0
  %63 = vmatpush1.msra.mxu0 0.0
  %64 = vmatprep.subr.mxu0 0.0
  %65 = vmatpush1.msra.mxu0 0.0
  %66 = vmatprep.subr.mxu0 0.0
  %67 = vmatpush1.msra.mxu0 0.0
  %68 = vmatprep.subr.mxu0 0.0
  %69 = vmatpush1.msra.mxu0 0.0
  %70 = vmatprep.subr.mxu0 0.0
  %71 = vmatpush1.msra.mxu0 0.0
  %72 = vmatprep.subr.mxu0 0.0
  %73 = vmatpush1.msra.mxu0 0.0
  %74 = vmatprep.subr.mxu0 0.0
  %75 = vmatpush1.msra.mxu0 0.0
  %76 = vmatprep.subr.mxu0 0.0
  %77 = vmatpush1.msra.mxu0 0.0
  %78 = vmatprep.subr.mxu0 0.0
  %79 = vmatpush1.msra.mxu0 0.0
  %80 = vmatprep.subr.mxu0 0.0
  %81 = vmatpush1.msra.mxu0 0.0
  %82 = vmatprep.subr.mxu0 0.0
  %83 = vmatpush1.msra.mxu0 0.0
  %84 = vmatprep.subr.mxu0 0.0
  %85 = vmatpush1.msra.mxu0 0.0
  %86 = vmatprep.subr.mxu0 0.0
  %87 = vmatpush1.msra.mxu0 0.0
  %88 = vmatprep.subr.mxu0 0.0
  %89 = vmatpush1.msra.mxu0 0.0
  %90 = vmatprep.subr.mxu0 0.0
  %91 = vmatpush1.msra.mxu0 0.0
  %92 = vmatprep.subr.mxu0 0.0
  %93 = vmatpush1.msra.mxu0 0.0
  %94 = vmatprep.subr.mxu0 0.0
  %95 = vmatpush1.msra.mxu0 0.0
  %96 = vmatprep.subr.mxu0 0.0
  %97 = vmatpush1.msra.mxu0 0.0
  %98 = vmatprep.subr.mxu0 0.0
  %99 = vmatpush1.msra.mxu0 0.0
  %100 = vmatprep.subr.mxu0 0.0
  %101 = vmatpush1.msra.mxu0 0.0
  %102 = vmatprep.subr.mxu0 0.0
  %103 = vmatpush1.msra.mxu0 0.0
  %104 = vmatprep.subr.mxu0 0.0
  %105 = vmatpush1.msra.mxu0 0.0
  %106 = vmatprep.subr.mxu0 0.0
  %107 = vmatpush1.msra.mxu0 0.0
  %108 = vmatprep.subr.mxu0 0.0
  %109 = vmatpush1.msra.mxu0 0.0
  %110 = vmatprep.subr.mxu0 0.0
  %111 = vmatpush1.msra.mxu0 0.0
  %112 = vmatprep.mubr.f32.mxu0 0.0
  %113 = vmatmul.mubr.f32.gmra.mrb[0].mxu0 %v46
  %v114 = vpop.f32.mrb[0].mxu0
  %v115 = vadd.f32 0.0, %v114
  %v116 = vpop.f32.mrb[0].mxu0
  %117 = vdwg.mxu0
  %v119 = vsel %vm44, %v34, 0
  %121 = vmatprep.subr.mxu0 0.0
  %122 = vmatpush1.msra.mxu0 %v35
  %123 = vmatprep.subr.mxu0 0.0
  %124 = vmatpush1.msra.mxu0 %v36
  %125 = vmatprep.subr.mxu0 0.0
  %126 = vmatpush1.msra.mxu0 %v37
  %127 = vmatprep.subr.mxu0 0.0
  %128 = vmatpush1.msra.mxu0 %v38
  %129 = vmatprep.subr.mxu0 0.0
  %130 = vmatpush1.msra.mxu0 0.0
  %131 = vmatprep.subr.mxu0 0.0
  %132 = vmatpush1.msra.mxu0 0.0
  %133 = vmatprep.subr.mxu0 0.0
  %134 = vmatpush1.msra.mxu0 0.0
  %135 = vmatprep.subr.mxu0 0.0
  %136 = vmatpush1.msra.mxu0 0.0
  %137 = vmatprep.subr.mxu0 0.0
  %138 = vmatpush1.msra.mxu0 0.0
  %139 = vmatprep.subr.mxu0 0.0
  %140 = vmatpush1.msra.mxu0 0.0
  %141 = vmatprep.subr.mxu0 0.0
  %142 = vmatpush1.msra.mxu0 0.0
  %143 = vmatprep.subr.mxu0 0.0
  %144 = vmatpush1.msra.mxu0 0.0
  %145 = vmatprep.subr.mxu0 0.0
  %146 = vmatpush1.msra.mxu0 0.0
  %147 = vmatprep.subr.mxu0 0.0
  %148 = vmatpush1.msra.mxu0 0.0
  %149 = vmatprep.subr.mxu0 0.0
  %150 = vmatpush1.msra.mxu0 0.0
  %151 = vmatprep.subr.mxu0 0.0
  %152 = vmatpush1.msra.mxu0 0.0
  %153 = vmatprep.subr.mxu0 0.0
  %154 = vmatpush1.msra.mxu0 0.0
  %155 = vmatprep.subr.mxu0 0.0
  %156 = vmatpush1.msra.mxu0 0.0
  %157 = vmatprep.subr.mxu0 0.0
  %158 = vmatpush1.msra.mxu0 0.0
  %159 = vmatprep.subr.mxu0 0.0
  %160 = vmatpush1.msra.mxu0 0.0
  %161 = vmatprep.subr.mxu0 0.0
  %162 = vmatpush1.msra.mxu0 0.0
  %163 = vmatprep.subr.mxu0 0.0
  %164 = vmatpush1.msra.mxu0 0.0
  %165 = vmatprep.subr.mxu0 0.0
  %166 = vmatpush1.msra.mxu0 0.0
  %167 = vmatprep.subr.mxu0 0.0
  %168 = vmatpush1.msra.mxu0 0.0
  %169 = vmatprep.subr.mxu0 0.0
  %170 = vmatpush1.msra.mxu0 0.0
  %171 = vmatprep.subr.mxu0 0.0
  %172 = vmatpush1.msra.mxu0 0.0
  %173 = vmatprep.subr.mxu0 0.0
  %174 = vmatpush1.msra.mxu0 0.0
  %175 = vmatprep.subr.mxu0 0.0
  %176 = vmatpush1.msra.mxu0 0.0
  %177 = vmatprep.subr.mxu0 0.0
  %178 = vmatpush1.msra.mxu0 0.0
  %179 = vmatprep.subr.mxu0 0.0
  %180 = vmatpush1.msra.mxu0 0.0
  %181 = vmatprep.subr.mxu0 0.0
  %182 = vmatpush1.msra.mxu0 0.0
  %183 = vmatprep.subr.mxu0 0.0
  %184 = vmatpush1.msra.mxu0 0.0
  %185 = vmatprep.mubr.f32.mxu0 0.0
  %186 = vmatmul.mubr.f32.gmra.mrb[0].mxu0 %v119
  %v187 = vpop.f32.mrb[0].mxu0
  %v188 = vadd.f32 %v115, %v187
  %v189 = vpop.f32.mrb[0].mxu0
  %190 = vdwg.mxu0
  %v191 = vld [vmem:[%s4] sm:$0x1]
  %v193 = vlaneseq
  %v194 = vshrl.u32 %v193, 7
  %v195 = vsub.s32 0, %v194
  %v196 = vrot.slane %v191, %v195
  %v198 = vadd.f32 %v188, %v196
  %v199 = vsel %vm44, %v198, 0.0
  %200 = vadd.xlane.f32.xlu0 %v199
  %v201 = vpop.xlane.xlu0 %200
  %v202 = vmul.f32 %v201, 0.03125
  %v203 = vsub.f32 %v198, %v202
  %v204 = vmul.f32 %v203, %v203
  %v205 = vsel %vm44, %v204, 0.0
  %206 = vadd.xlane.f32.xlu0 %v205
  %v207 = vpop.xlane.xlu0 %206
  %v208 = vmul.f32 %v207, 0.03125
  %v209 = vadd.f32 %v208, 1e-05
  %v210 = vrsqrt.pop %v209
  %v211 = vmul.f32 %v203, %v210
  %v212 = vld [vmem:[%s5] sm:$0x1]
  %v214 = vlaneseq
  %v215 = vshrl.u32 %v214, 7
  %v216 = vsub.s32 0, %v215
  %v217 = vrot.slane %v212, %v216
  %v219 = vmul.f32 %v211, %v217
  %v220 = vld [vmem:[%s6] sm:$0x1]
  %v222 = vlaneseq
  %v223 = vshrl.u32 %v222, 7
  %v224 = vsub.s32 0, %v223
  %v225 = vrot.slane %v220, %v224
  %v227 = vadd.f32 %v219, %v225
  %v228 = vmul.f32 %v227, 0.5
  %v229 = vmul.f32 %v227, 0.70710677
  %v230 = verf.f32.pop %v229
  %v231 = vadd.f32 %v230, 1.0
  %v232 = vmul.f32 %v228, %v231
  %v233 = vld [vmem:[%s7] sm:$0x1]
  %v234 = vld [vmem:[#allocation2] sm:$0x1]
  %v236 = vlaneseq
  %v237 = vshrl.u32 %v236, 7
  %v238 = vsub.s32 0, %v237
  %v239 = vrot.slane %v233, %v238
  %v241 = vmul.f32 %v232, %v239
  %v242 = vsel %vm44, %v241, 0.0
  %243 = vadd.xlane.f32.xlu0 %v242
  %v244 = vpop.xlane.xlu0 %243
  %v246 = vlaneseq
  %v247 = vshrl.u32 %v246, 7
  %v248 = vsub.s32 0, %v247
  %v249 = vrot.slane %v234, %v248
  %v251 = vadd.f32 %v244, %v249
  %v252 = vxor.u32 %v251, 2147483648
  %v253 = vmul.f32 %v252, 1.442695
  %v254 = vpow.pop %v253
  %v255 = vadd.f32 %v254, 1.0
  %v256 = vrcp.pop %v255
  %v257 = vmul.f32 1.0, %v256
  %vm258 = vcmask 7168
  %259 = vst.msk [vmem:[%s9] sm:$0xff] %vm258, %v257
  // Predicated region
  $region38: #{link_predict_head.1} parent=0 // pred_check
    _
  $region39: #{link_predict_head.1} parent=0 // pred_check_branch
    %261 = sbr.rel (0) target = $region41
  $region40: #{link_predict_head.1} parent=0 // pred_region
    _
  $region41: #{link_predict_head.1} parent=0 // pred_fallthru
    _
  // Predicated region
  $region42: #{link_predict_head.1} parent=0 // pred_check
    _
  $region43: #{link_predict_head.1} parent=0 // pred_check_branch
    %263 = sbr.rel (0) target = $region45
  $region44: #{link_predict_head.1} parent=0 // pred_region
    _
  $region45: #{link_predict_head.1} parent=0 // pred_fallthru
    _

</llo_original>
